<compile_context>
chip_gen: v6e
topology: v6e:2x2x1
jax: 0.10.0
libtpu: 0.0.40
codegen_flags: <defaults>
</compile_context>

<pallas_src>
import math
from functools import partial

import jax
import jax.numpy as jnp
from jax import lax
from jax.experimental import pallas as pl
from jax.experimental.pallas import tpu as pltpu


def _round_up(x, m):
    return ((x + m - 1) // m) * m


def _gelu(x, approximate):
    if approximate:
        # tanh GELU: routes the transcendental to the EUP slot (co-issues with
        # MXU/VPU work); only use if exact nn.GELU() numerics can be relaxed.
        c = math.sqrt(2.0 / math.pi)
        return 0.5 * x * (1.0 + jnp.tanh(c * (x + 0.044715 * x * x * x)))
    # PyTorch nn.GELU() default: exact erf formulation.
    return 0.5 * x * (1.0 + lax.erf(x * (1.0 / math.sqrt(2.0))))


def encoder_block_kernel(x_ref, w1_ref, b1_ref, w2_ref, b2_ref, w3_ref, b3_ref,
                         o_ref, *, approximate_gelu, compute_dtype):
    # All three matmuls + both GELUs fused; intermediates never leave VMEM.
    x = x_ref[...].astype(compute_dtype)

    h = jnp.dot(x, w1_ref[...], preferred_element_type=jnp.float32) + b1_ref[...]
    h = _gelu(h, approximate_gelu)

    h = jnp.dot(h.astype(compute_dtype), w2_ref[...],
                preferred_element_type=jnp.float32) + b2_ref[...]
    h = _gelu(h, approximate_gelu)

    out = jnp.dot(h.astype(compute_dtype), w3_ref[...],
                  preferred_element_type=jnp.float32) + b3_ref[...]
    o_ref[...] = out.astype(o_ref.dtype)


def _physical_vmem_bytes():
    try:
        info = pltpu.get_tpu_info()
        for attr in ("vmem_capacity_bytes", "vmem_bytes", "vmem_size_bytes"):
            v = getattr(info, attr, None)
            if v:
                return int(v)
    except Exception:
        pass
    return 64 * 1024 * 1024  # conservative: v7x per-TensorCore VMEM


def _pick_batch_tile(B, block_rows):
    """Balanced, sublane-aligned batch tiles; >=2 tiles when B allows (v7x)."""
    if B <= 8:
        return B                       # single partial/full tile
    n_target = max(2, pl.cdiv(B, block_rows))
    bm = _round_up(pl.cdiv(B, n_target), 8)
    return min(bm, _round_up(B, 8))


def prepare_params(params, *, compute_dtype=jnp.float32):
    """Hoisted one-time preprocessing (do NOT call per forward step).

    Pads the hidden feature dim to a multiple of 128 (lane-dense intermediates;
    padded columns stay exactly zero through the MLP) and optionally casts the
    weights to bf16 for MXU-native matmuls. Biases stay f32 (added to the f32
    accumulator). x's input dim and the output dim keep their natural sizes so
    the forward pass needs no per-call pad/slice copies.
    """
    in_dim = params["w1"].shape[0]
    out_dim = params["w3"].shape[1]
    in_p = _round_up(in_dim, 128)
    ph = in_p - in_dim
    return dict(
        w1=jnp.pad(params["w1"], ((0, 0), (0, ph))).astype(compute_dtype),
        b1=jnp.pad(params["b1"], ((0, 0), (0, ph))),
        w2=jnp.pad(params["w2"], ((0, ph), (0, ph))).astype(compute_dtype),
        b2=jnp.pad(params["b2"], ((0, 0), (0, ph))),
        w3=jnp.pad(params["w3"], ((0, ph), (0, 0))).astype(compute_dtype),
        b3=params["b3"],
        in_dim=in_dim, in_p=in_p, out_dim=out_dim, compute_dtype=compute_dtype,
    )


def _forward(x, p, *, block_rows, approximate_gelu, single_buffer_weights):
    B, in_dim = x.shape
    assert in_dim == p["in_dim"], "x feature dim does not match prepared params"
    in_p, out_dim = p["in_p"], p["out_dim"]
    cdt = p["compute_dtype"]

    bm = _pick_batch_tile(B, block_rows)
    n_tiles = pl.cdiv(B, bm)

    # Grid-invariant operands: constant index_map (DMA'd once, VMEM-resident);
    # request single buffering so they are not needlessly double-buffered.
    w_kw = dict(pipeline_mode=pl.Buffered(1)) if single_buffer_weights else {}
    const0 = lambda i: (0, 0)
    in_specs = [
        pl.BlockSpec((bm, in_dim), lambda i: (i, 0)),        # x: batch-tiled
        pl.BlockSpec((in_dim, in_p), const0, **w_kw),        # w1
        pl.BlockSpec((1, in_p), const0, **w_kw),             # b1
        pl.BlockSpec((in_p, in_p), const0, **w_kw),          # w2
        pl.BlockSpec((1, in_p), const0, **w_kw),             # b2
        pl.BlockSpec((in_p, out_dim), const0, **w_kw),       # w3
        pl.BlockSpec((1, out_dim), const0, **w_kw),          # b3
    ]
    out_spec = pl.BlockSpec((bm, out_dim), lambda i: (i, 0))

    # VMEM accounting matching actual buffering & dtypes.
    f32 = 4
    w_item = jnp.dtype(cdt).itemsize
    w_read_bytes = ((in_dim * in_p + in_p * in_p + in_p * out_dim) * w_item
                    + (2 * in_p + out_dim) * f32)
    w_buf_bytes = w_read_bytes * (1 if single_buffer_weights else 2)
    act_bytes = 2 * bm * in_dim * f32 + 2 * bm * out_dim * f32  # double-buffered
    interm_bytes = 3 * bm * in_p * f32                          # h1/h2/headroom
    vmem_needed = w_buf_bytes + act_bytes + interm_bytes
    vmem_cap = int(0.875 * _physical_vmem_bytes())
    vmem_limit = min(vmem_cap, max(32 * 1024 * 1024, int(1.3 * vmem_needed)))

    cost = pl.CostEstimate(
        flops=2 * B * (in_dim * in_p + in_p * in_p + in_p * out_dim),
        transcendentals=2 * B * in_p,
        bytes_accessed=B * in_dim * f32 + B * out_dim * f32 + w_read_bytes,
    )

    kern = partial(encoder_block_kernel,
                   approximate_gelu=approximate_gelu, compute_dtype=cdt)

    return pl.pallas_call(
        kern,
        out_shape=jax.ShapeDtypeStruct((B, out_dim), x.dtype),
        grid=(n_tiles,),
        in_specs=in_specs,
        out_specs=out_spec,
        compiler_params=pltpu.CompilerParams(
            dimension_semantics=("parallel",),
            vmem_limit_bytes=vmem_limit,
        ),
        cost_estimate=cost,
    )(x, p["w1"], p["b1"], p["w2"], p["b2"], p["w3"], p["b3"])


def encoder_block_forward(x, prepared, *, block_rows=512, approximate_gelu=False):
    """x: (B, in_dim) float32; prepared: output of prepare_params()."""
    try:
        return _forward(x, prepared, block_rows=block_rows,
                        approximate_gelu=approximate_gelu,
                        single_buffer_weights=True)
    except Exception:
        # pl.Buffered(1) not supported on this jax/libtpu: fall back to default
        # (double-buffered) weight pipelining.
        return _forward(x, prepared, block_rows=block_rows,
                        approximate_gelu=approximate_gelu,
                        single_buffer_weights=False)


def init_params(key, in_dim, out_dim):
    """Deterministic PyTorch-style init. Weights stored as (in, out) so the
    kernel computes x @ W + b (== torch's x @ W.T + b)."""
    ks = jax.random.split(key, 6)

    def linear(kw, kb, fan_in, fan_out):
        bound = 1.0 / math.sqrt(fan_in)
        w = jax.random.uniform(kw, (fan_in, fan_out), jnp.float32, -bound, bound)
        b = jax.random.uniform(kb, (1, fan_out), jnp.float32, -bound, bound)
        return w, b

    w1, b1 = linear(ks[0], ks[1], in_dim, in_dim)
    w2, b2 = linear(ks[2], ks[3], in_dim, in_dim)
    w3, b3 = linear(ks[4], ks[5], in_dim, out_dim)
    return dict(w1=w1, b1=b1, w2=w2, b2=b2, w3=w3, b3=b3)


def _reference(x, p):
    h = jax.nn.gelu(x @ p["w1"] + p["b1"], approximate=False)
    h = jax.nn.gelu(h @ p["w2"] + p["b2"], approximate=False)
    return h @ p["w3"] + p["b3"]


if __name__ == "__main__":
    key = jax.random.PRNGKey(0)
    k_x, k_p = jax.random.split(key)

    batch, in_dim, out_dim = 8, 32, 16
    x = jax.random.normal(k_x, (batch, in_dim), jnp.float32)
    params = init_params(k_p, in_dim, out_dim)

    # One-time (hoisted) weight preprocessing.
    prepared = prepare_params(params)

    out = jax.block_until_ready(encoder_block_forward(x, prepared))
    ref = _reference(x, params)
    assert out.shape == (batch, out_dim)
    assert jnp.allclose(out, ref, atol=1e-4, rtol=1e-4)

    # Larger batch: 2 balanced tiles (partial tail block, megacore-friendly).
    x2 = jax.random.normal(jax.random.fold_in(k_x, 1), (600, in_dim), jnp.float32)
    ref2 = _reference(x2, params)
    out2 = jax.block_until_ready(encoder_block_forward(x2, prepared))
    assert out2.shape == (600, out_dim)
    assert jnp.allclose(out2, ref2, atol=1e-4, rtol=1e-4)

    # Optional bf16-weight path (MXU-native, f32 accumulate): looser tolerance.
    prepared_bf16 = prepare_params(params, compute_dtype=jnp.bfloat16)
    out3 = jax.block_until_ready(encoder_block_forward(x2, prepared_bf16))
    assert jnp.allclose(out3, ref2, atol=5e-2, rtol=5e-2)

    # Optional tanh-approx GELU (EUP slot instead of VPU erf polynomial).
    out4 = jax.block_until_ready(
        encoder_block_forward(x2, prepared, approximate_gelu=True))
    assert jnp.allclose(out4, ref2, atol=5e-2, rtol=5e-2)

    print("KERNEL_OK")
</pallas_src>

<mosaic_0001>
module attributes {stable_mosaic.version = 11 : i64} {
  func.func @encoder_block_kernel(%arg0: i32, %arg1: memref<8x32xf32, #tpu.memory_space<vmem>>, %arg2: memref<32x128xf32, #tpu.memory_space<vmem>>, %arg3: memref<1x128xf32, #tpu.memory_space<vmem>>, %arg4: memref<128x128xf32, #tpu.memory_space<vmem>>, %arg5: memref<1x128xf32, #tpu.memory_space<vmem>>, %arg6: memref<128x16xf32, #tpu.memory_space<vmem>>, %arg7: memref<1x16xf32, #tpu.memory_space<vmem>>, %arg8: memref<8x16xf32, #tpu.memory_space<vmem>>) attributes {dimension_semantics = [#tpu.dimension_semantics<parallel>], iteration_bounds = array<i64: 1>, scalar_prefetch = 0 : i64, scratch_operands = 0 : i64, tpu.core_type = #tpu.core_type<tc>, window_params = [{transform_indices = @transform_0, window_bounds = array<i64: 8, 32>}, {pipeline_mode = #tpu.pipeline_mode<synchronous>, transform_indices = @transform_1, window_bounds = array<i64: 32, 128>}, {pipeline_mode = #tpu.pipeline_mode<synchronous>, transform_indices = @transform_2, window_bounds = array<i64: 1, 128>}, {pipeline_mode = #tpu.pipeline_mode<synchronous>, transform_indices = @transform_3, window_bounds = array<i64: 128, 128>}, {pipeline_mode = #tpu.pipeline_mode<synchronous>, transform_indices = @transform_4, window_bounds = array<i64: 1, 128>}, {pipeline_mode = #tpu.pipeline_mode<synchronous>, transform_indices = @transform_5, window_bounds = array<i64: 128, 16>}, {pipeline_mode = #tpu.pipeline_mode<synchronous>, transform_indices = @transform_6, window_bounds = array<i64: 1, 16>}, {transform_indices = @transform_7, window_bounds = array<i64: 8, 16>}]} {
    %c0 = arith.constant 0 : index
    %c0_0 = arith.constant 0 : index
    %0 = vector.load %arg1[%c0, %c0_0] : memref<8x32xf32, #tpu.memory_space<vmem>>, vector<8x32xf32>
    %c0_1 = arith.constant 0 : index
    %c0_2 = arith.constant 0 : index
    %1 = vector.load %arg2[%c0_1, %c0_2] : memref<32x128xf32, #tpu.memory_space<vmem>>, vector<32x128xf32>
    %cst = arith.constant dense<0.000000e+00> : vector<8x128xf32>
    %2 = tpu.matmul %0, %1, %cst {dimension_numbers = #tpu.dot_dimension_numbers<[1], [0], [0], [1], [0, 0, 1, 1], [], []>} : vector<8x32xf32>, vector<32x128xf32>, vector<8x128xf32> -> vector<8x128xf32>
    %c0_3 = arith.constant 0 : index
    %c0_4 = arith.constant 0 : index
    %3 = vector.load %arg3[%c0_3, %c0_4] : memref<1x128xf32, #tpu.memory_space<vmem>>, vector<1x128xf32>
    %4 = vector.broadcast %3 : vector<1x128xf32> to vector<8x128xf32>
    %5 = arith.addf %2, %4 : vector<8x128xf32>
    %cst_5 = arith.constant 5.000000e-01 : f32
    %6 = vector.broadcast %cst_5 : f32 to vector<8x128xf32>
    %7 = arith.mulf %6, %5 : vector<8x128xf32>
    %cst_6 = arith.constant 0.707106769 : f32
    %8 = vector.broadcast %cst_6 : f32 to vector<8x128xf32>
    %9 = arith.mulf %5, %8 : vector<8x128xf32>
    %10 = math.erf %9 : vector<8x128xf32>
    %cst_7 = arith.constant 1.000000e+00 : f32
    %11 = vector.broadcast %cst_7 : f32 to vector<8x128xf32>
    %12 = arith.addf %11, %10 : vector<8x128xf32>
    %13 = arith.mulf %7, %12 : vector<8x128xf32>
    %c0_8 = arith.constant 0 : index
    %c0_9 = arith.constant 0 : index
    %14 = vector.load %arg4[%c0_8, %c0_9] : memref<128x128xf32, #tpu.memory_space<vmem>>, vector<128x128xf32>
    %cst_10 = arith.constant dense<0.000000e+00> : vector<8x128xf32>
    %15 = tpu.matmul %13, %14, %cst_10 {dimension_numbers = #tpu.dot_dimension_numbers<[1], [0], [0], [1], [0, 0, 1, 1], [], []>} : vector<8x128xf32>, vector<128x128xf32>, vector<8x128xf32> -> vector<8x128xf32>
    %c0_11 = arith.constant 0 : index
    %c0_12 = arith.constant 0 : index
    %16 = vector.load %arg5[%c0_11, %c0_12] : memref<1x128xf32, #tpu.memory_space<vmem>>, vector<1x128xf32>
    %17 = vector.broadcast %16 : vector<1x128xf32> to vector<8x128xf32>
    %18 = arith.addf %15, %17 : vector<8x128xf32>
    %cst_13 = arith.constant 5.000000e-01 : f32
    %19 = vector.broadcast %cst_13 : f32 to vector<8x128xf32>
    %20 = arith.mulf %19, %18 : vector<8x128xf32>
    %cst_14 = arith.constant 0.707106769 : f32
    %21 = vector.broadcast %cst_14 : f32 to vector<8x128xf32>
    %22 = arith.mulf %18, %21 : vector<8x128xf32>
    %23 = math.erf %22 : vector<8x128xf32>
    %cst_15 = arith.constant 1.000000e+00 : f32
    %24 = vector.broadcast %cst_15 : f32 to vector<8x128xf32>
    %25 = arith.addf %24, %23 : vector<8x128xf32>
    %26 = arith.mulf %20, %25 : vector<8x128xf32>
    %c0_16 = arith.constant 0 : index
    %c0_17 = arith.constant 0 : index
    %27 = vector.load %arg6[%c0_16, %c0_17] : memref<128x16xf32, #tpu.memory_space<vmem>>, vector<128x16xf32>
    %cst_18 = arith.constant dense<0.000000e+00> : vector<8x16xf32>
    %28 = tpu.matmul %26, %27, %cst_18 {dimension_numbers = #tpu.dot_dimension_numbers<[1], [0], [0], [1], [0, 0, 1, 1], [], []>} : vector<8x128xf32>, vector<128x16xf32>, vector<8x16xf32> -> vector<8x16xf32>
    %c0_19 = arith.constant 0 : index
    %c0_20 = arith.constant 0 : index
    %29 = vector.load %arg7[%c0_19, %c0_20] : memref<1x16xf32, #tpu.memory_space<vmem>>, vector<1x16xf32>
    %30 = vector.broadcast %29 : vector<1x16xf32> to vector<8x16xf32>
    %31 = arith.addf %28, %30 : vector<8x16xf32>
    %c0_21 = arith.constant 0 : index
    %c0_22 = arith.constant 0 : index
    %32 = vector.load %arg8[%c0_21, %c0_22] : memref<8x16xf32, #tpu.memory_space<vmem>>, vector<8x16xf32>
    tpu.vector_store %arg8[%c0_21, %c0_22], %31 {strides = array<i32>} : memref<8x16xf32, #tpu.memory_space<vmem>>, vector<8x16xf32>,
    return
  }
  func.func @transform_0(%arg0: i32) -> (i32, i32) {
    %c0_i32 = arith.constant 0 : i32
    %c0_i32_0 = arith.constant 0 : i32
    return %arg0, %c0_i32 : i32, i32
  }
  func.func @transform_1(%arg0: i32) -> (i32, i32) {
    %c0_i32 = arith.constant 0 : i32
    %c0_i32_0 = arith.constant 0 : i32
    %c0_i32_1 = arith.constant 0 : i32
    return %c0_i32, %c0_i32_0 : i32, i32
  }
  func.func @transform_2(%arg0: i32) -> (i32, i32) {
    %c0_i32 = arith.constant 0 : i32
    %c0_i32_0 = arith.constant 0 : i32
    %c0_i32_1 = arith.constant 0 : i32
    return %c0_i32, %c0_i32_0 : i32, i32
  }
  func.func @transform_3(%arg0: i32) -> (i32, i32) {
    %c0_i32 = arith.constant 0 : i32
    %c0_i32_0 = arith.constant 0 : i32
    %c0_i32_1 = arith.constant 0 : i32
    return %c0_i32, %c0_i32_0 : i32, i32
  }
  func.func @transform_4(%arg0: i32) -> (i32, i32) {
    %c0_i32 = arith.constant 0 : i32
    %c0_i32_0 = arith.constant 0 : i32
    %c0_i32_1 = arith.constant 0 : i32
    return %c0_i32, %c0_i32_0 : i32, i32
  }
  func.func @transform_5(%arg0: i32) -> (i32, i32) {
    %c0_i32 = arith.constant 0 : i32
    %c0_i32_0 = arith.constant 0 : i32
    %c0_i32_1 = arith.constant 0 : i32
    return %c0_i32, %c0_i32_0 : i32, i32
  }
  func.func @transform_6(%arg0: i32) -> (i32, i32) {
    %c0_i32 = arith.constant 0 : i32
    %c0_i32_0 = arith.constant 0 : i32
    %c0_i32_1 = arith.constant 0 : i32
    return %c0_i32, %c0_i32_0 : i32, i32
  }
  func.func @transform_7(%arg0: i32) -> (i32, i32) {
    %c0_i32 = arith.constant 0 : i32
    %c0_i32_0 = arith.constant 0 : i32
    return %arg0, %c0_i32 : i32, i32
  }
}

module attributes {stable_mosaic.version = 11 : i64} {
  func.func @encoder_block_kernel(%arg0: i32, %arg1: memref<8x32xf32, #tpu.memory_space<vmem>>, %arg2: memref<32x128xf32, #tpu.memory_space<vmem>>, %arg3: memref<1x128xf32, #tpu.memory_space<vmem>>, %arg4: memref<128x128xf32, #tpu.memory_space<vmem>>, %arg5: memref<1x128xf32, #tpu.memory_space<vmem>>, %arg6: memref<128x16xf32, #tpu.memory_space<vmem>>, %arg7: memref<1x16xf32, #tpu.memory_space<vmem>>, %arg8: memref<8x16xf32, #tpu.memory_space<vmem>>) attributes {dimension_semantics = [#tpu.dimension_semantics<parallel>], iteration_bounds = array<i64: 1>, scalar_prefetch = 0 : i64, scratch_operands = 0 : i64, tpu.core_type = #tpu.core_type<tc>, window_params = [{transform_indices = @transform_0, window_bounds = array<i64: 8, 32>}, {pipeline_mode = #tpu.pipeline_mode<synchronous>, transform_indices = @transform_1, window_bounds = array<i64: 32, 128>}, {pipeline_mode = #tpu.pipeline_mode<synchronous>, transform_indices = @transform_2, window_bounds = array<i64: 1, 128>}, {pipeline_mode = #tpu.pipeline_mode<synchronous>, transform_indices = @transform_3, window_bounds = array<i64: 128, 128>}, {pipeline_mode = #tpu.pipeline_mode<synchronous>, transform_indices = @transform_4, window_bounds = array<i64: 1, 128>}, {pipeline_mode = #tpu.pipeline_mode<synchronous>, transform_indices = @transform_5, window_bounds = array<i64: 128, 16>}, {pipeline_mode = #tpu.pipeline_mode<synchronous>, transform_indices = @transform_6, window_bounds = array<i64: 1, 16>}, {transform_indices = @transform_7, window_bounds = array<i64: 8, 16>}]} {
    %c0 = arith.constant 0 : index
    %c0_0 = arith.constant 0 : index
    %0 = vector.load %arg1[%c0, %c0_0] : memref<8x32xf32, #tpu.memory_space<vmem>>, vector<8x32xf32>
    %c0_1 = arith.constant 0 : index
    %c0_2 = arith.constant 0 : index
    %1 = vector.load %arg2[%c0_1, %c0_2] : memref<32x128xf32, #tpu.memory_space<vmem>>, vector<32x128xf32>
    %cst = arith.constant dense<0.000000e+00> : vector<8x128xf32>
    %2 = tpu.matmul %0, %1, %cst {dimension_numbers = #tpu.dot_dimension_numbers<[1], [0], [0], [1], [0, 0, 1, 1], [], []>} : vector<8x32xf32>, vector<32x128xf32>, vector<8x128xf32> -> vector<8x128xf32>
    %c0_3 = arith.constant 0 : index
    %c0_4 = arith.constant 0 : index
    %3 = vector.load %arg3[%c0_3, %c0_4] : memref<1x128xf32, #tpu.memory_space<vmem>>, vector<1x128xf32>
    %4 = vector.broadcast %3 : vector<1x128xf32> to vector<8x128xf32>
    %5 = arith.addf %2, %4 : vector<8x128xf32>
    %cst_5 = arith.constant 5.000000e-01 : f32
    %6 = vector.broadcast %cst_5 : f32 to vector<8x128xf32>
    %7 = arith.mulf %6, %5 : vector<8x128xf32>
    %cst_6 = arith.constant 0.707106769 : f32
    %8 = vector.broadcast %cst_6 : f32 to vector<8x128xf32>
    %9 = arith.mulf %5, %8 : vector<8x128xf32>
    %10 = math.erf %9 : vector<8x128xf32>
    %cst_7 = arith.constant 1.000000e+00 : f32
    %11 = vector.broadcast %cst_7 : f32 to vector<8x128xf32>
    %12 = arith.addf %11, %10 : vector<8x128xf32>
    %13 = arith.mulf %7, %12 : vector<8x128xf32>
    %c0_8 = arith.constant 0 : index
    %c0_9 = arith.constant 0 : index
    %14 = vector.load %arg4[%c0_8, %c0_9] : memref<128x128xf32, #tpu.memory_space<vmem>>, vector<128x128xf32>
    %cst_10 = arith.constant dense<0.000000e+00> : vector<8x128xf32>
    %15 = tpu.matmul %13, %14, %cst_10 {dimension_numbers = #tpu.dot_dimension_numbers<[1], [0], [0], [1], [0, 0, 1, 1], [], []>} : vector<8x128xf32>, vector<128x128xf32>, vector<8x128xf32> -> vector<8x128xf32>
    %c0_11 = arith.constant 0 : index
    %c0_12 = arith.constant 0 : index
    %16 = vector.load %arg5[%c0_11, %c0_12] : memref<1x128xf32, #tpu.memory_space<vmem>>, vector<1x128xf32>
    %17 = vector.broadcast %16 : vector<1x128xf32> to vector<8x128xf32>
    %18 = arith.addf %15, %17 : vector<8x128xf32>
    %cst_13 = arith.constant 5.000000e-01 : f32
    %19 = vector.broadcast %cst_13 : f32 to vector<8x128xf32>
    %20 = arith.mulf %19, %18 : vector<8x128xf32>
    %cst_14 = arith.constant 0.707106769 : f32
    %21 = vector.broadcast %cst_14 : f32 to vector<8x128xf32>
    %22 = arith.mulf %18, %21 : vector<8x128xf32>
    %23 = math.erf %22 : vector<8x128xf32>
    %cst_15 = arith.constant 1.000000e+00 : f32
    %24 = vector.broadcast %cst_15 : f32 to vector<8x128xf32>
    %25 = arith.addf %24, %23 : vector<8x128xf32>
    %26 = arith.mulf %20, %25 : vector<8x128xf32>
    %c0_16 = arith.constant 0 : index
    %c0_17 = arith.constant 0 : index
    %27 = vector.load %arg6[%c0_16, %c0_17] : memref<128x16xf32, #tpu.memory_space<vmem>>, vector<128x16xf32>
    %cst_18 = arith.constant dense<0.000000e+00> : vector<8x16xf32>
    %28 = tpu.matmul %26, %27, %cst_18 {dimension_numbers = #tpu.dot_dimension_numbers<[1], [0], [0], [1], [0, 0, 1, 1], [], []>} : vector<8x128xf32>, vector<128x16xf32>, vector<8x16xf32> -> vector<8x16xf32>
    %c0_19 = arith.constant 0 : index
    %c0_20 = arith.constant 0 : index
    %29 = vector.load %arg7[%c0_19, %c0_20] : memref<1x16xf32, #tpu.memory_space<vmem>>, vector<1x16xf32>
    %30 = vector.broadcast %29 : vector<1x16xf32> to vector<8x16xf32>
    %31 = arith.addf %28, %30 : vector<8x16xf32>
    %c0_21 = arith.constant 0 : index
    %c0_22 = arith.constant 0 : index
    %32 = vector.load %arg8[%c0_21, %c0_22] : memref<8x16xf32, #tpu.memory_space<vmem>>, vector<8x16xf32>
    tpu.vector_store %arg8[%c0_21, %c0_22], %31 {strides = array<i32>} : memref<8x16xf32, #tpu.memory_space<vmem>>, vector<8x16xf32>,
    return
  }
  func.func @transform_0(%arg0: i32) -> (i32, i32) {
    %c0_i32 = arith.constant 0 : i32
    %c0_i32_0 = arith.constant 0 : i32
    return %arg0, %c0_i32 : i32, i32
  }
  func.func @transform_1(%arg0: i32) -> (i32, i32) {
    %c0_i32 = arith.constant 0 : i32
    %c0_i32_0 = arith.constant 0 : i32
    %c0_i32_1 = arith.constant 0 : i32
    return %c0_i32, %c0_i32_0 : i32, i32
  }
  func.func @transform_2(%arg0: i32) -> (i32, i32) {
    %c0_i32 = arith.constant 0 : i32
    %c0_i32_0 = arith.constant 0 : i32
    %c0_i32_1 = arith.constant 0 : i32
    return %c0_i32, %c0_i32_0 : i32, i32
  }
  func.func @transform_3(%arg0: i32) -> (i32, i32) {
    %c0_i32 = arith.constant 0 : i32
    %c0_i32_0 = arith.constant 0 : i32
    %c0_i32_1 = arith.constant 0 : i32
    return %c0_i32, %c0_i32_0 : i32, i32
  }
  func.func @transform_4(%arg0: i32) -> (i32, i32) {
    %c0_i32 = arith.constant 0 : i32
    %c0_i32_0 = arith.constant 0 : i32
    %c0_i32_1 = arith.constant 0 : i32
    return %c0_i32, %c0_i32_0 : i32, i32
  }
  func.func @transform_5(%arg0: i32) -> (i32, i32) {
    %c0_i32 = arith.constant 0 : i32
    %c0_i32_0 = arith.constant 0 : i32
    %c0_i32_1 = arith.constant 0 : i32
    return %c0_i32, %c0_i32_0 : i32, i32
  }
  func.func @transform_6(%arg0: i32) -> (i32, i32) {
    %c0_i32 = arith.constant 0 : i32
    %c0_i32_0 = arith.constant 0 : i32
    %c0_i32_1 = arith.constant 0 : i32
    return %c0_i32, %c0_i32_0 : i32, i32
  }
  func.func @transform_7(%arg0: i32) -> (i32, i32) {
    %c0_i32 = arith.constant 0 : i32
    %c0_i32_0 = arith.constant 0 : i32
    return %arg0, %c0_i32 : i32, i32
  }
}

</mosaic_0001>

<llo_original>
// kernel: tpu_custom_call.1
$region0: #{tpu_custom_call.1}
  #allocation0 [shape = 'u32[]', space=smem, size = 0x4, offset = 0x4, fixed_abs, tag = 'smem constant byte address 0x4 - core index']
  #allocation1 [shape = 'u32[144,128]{1,0:T(1,128)}', space=vmem, size = 0x12000, scoped, tag = 'internal scratch']
  %s0 = inlined_call_operand.vmem [shape: f32[8,32], index: 0, kind: input, shape index: {}]
  %s1 = inlined_call_operand.hbm [shape: f32[32,128], index: 1, kind: input, shape index: {}]
  %s2 = inlined_call_operand.vmem [shape: f32[1,128], index: 2, kind: input, shape index: {}]
  %s3 = inlined_call_operand.vmem [shape: f32[128,128], index: 3, kind: input, shape index: {}]
  %s4 = inlined_call_operand.vmem [shape: f32[1,128], index: 4, kind: input, shape index: {}]
  %s5 = inlined_call_operand.vmem [shape: f32[128,16], index: 5, kind: input, shape index: {}]
  %s6 = inlined_call_operand.vmem [shape: f32[1,16], index: 6, kind: input, shape index: {}]
  %s7 = inlined_call_operand.hbm [shape: f32[8,16], index: 7, kind: output, shape index: {}]
  %s8 = sld [smem:[#allocation0]]
  $region42: #{tpu_custom_call.1} parent=0
    _
  %s10 = ssub.s32 1, %s8
  %s11 = scalar_select 0, %s10, %s8
  $region1: #{tpu_custom_call.1} parent=0
    #allocation2 [shape = 'u8[16384]{0}', space=vmem, size = 0x4000, scoped, tag = 'input window, operand 1, single buffered']
    #allocation3 [shape = 's32[1]{0}', space=sflag, size = 0x4, scoped, tag = 'scoped memory for tpu_custom_call.1']
    #allocation4 [shape = 's32[1]{0}', space=sflag, size = 0x4, scoped, tag = 'scoped memory for tpu_custom_call.1']
    #allocation5 [shape = 'u8[4096]{0}', space=vmem, size = 0x1000, scoped, tag = 'output window, operand 0, single buffered']
    %12 = vsyncpa [#allocation3], 0
    %13 = vsyncpa [#allocation4], 0
    // Predicated region
    $region2: #{tpu_custom_call.1} parent=1 // pred_check
      _
    $region3: #{tpu_custom_call.1} parent=1 // pred_check_branch
      %15 = sbr.rel (0) target = $region5
    $region4: #{tpu_custom_call.1} parent=1 // pred_region
      _
    $region5: #{tpu_custom_call.1} parent=1 // pred_fallthru
      _
    // Predicated region
    $region6: #{tpu_custom_call.1} parent=1 // pred_check
      _
    $region7: #{tpu_custom_call.1} parent=1 // pred_check_branch
      %17 = sbr.rel (0) target = $region9
    $region8: #{tpu_custom_call.1} parent=1 // pred_region
      %s19 = ssub.s32 512, 512
      %20 = vsyncadd [#allocation3], %s19
      %s21 = sshll.u32 [#allocation2], 4
      %s22 = int_to_ptr.vmem [resolvable:$true] %s21
      %27 = dma.hbm_to_vmem [thread:$0]  %s1, 512, %s22, [#allocation3], 128, 128, 8
    $region9: #{tpu_custom_call.1} parent=1 // pred_fallthru
      _
    // Predicated region
    $region10: #{tpu_custom_call.1} parent=1 // pred_check
      _
    $region11: #{tpu_custom_call.1} parent=1 // pred_check_branch
      %29 = sbr.rel (0) target = $region13
    $region12: #{tpu_custom_call.1} parent=1 // pred_region
      _
    $region13: #{tpu_custom_call.1} parent=1 // pred_fallthru
      _
    // Predicated region
    $region14: #{tpu_custom_call.1} parent=1 // pred_check
      _
    $region15: #{tpu_custom_call.1} parent=1 // pred_check_branch
      %31 = sbr.rel (0) target = $region17
    $region16: #{tpu_custom_call.1} parent=1 // pred_region
      _
    $region17: #{tpu_custom_call.1} parent=1 // pred_fallthru
      _
    // Predicated region
    $region18: #{tpu_custom_call.1} parent=1 // pred_check
      _
    $region19: #{tpu_custom_call.1} parent=1 // pred_check_branch
      %33 = sbr.rel (0) target = $region21
    $region20: #{tpu_custom_call.1} parent=1 // pred_region
      _
    $region21: #{tpu_custom_call.1} parent=1 // pred_fallthru
      _
    // Predicated region
    $region22: #{tpu_custom_call.1} parent=1 // pred_check
      _
    $region23: #{tpu_custom_call.1} parent=1 // pred_check_branch
      %35 = sbr.rel (0) target = $region25
    $region24: #{tpu_custom_call.1} parent=1 // pred_region
      _
    $region25: #{tpu_custom_call.1} parent=1 // pred_fallthru
      _
    // Predicated region
    $region26: #{tpu_custom_call.1} parent=1 // pred_check
      _
    $region27: #{tpu_custom_call.1} parent=1 // pred_check_branch
      %37 = sbr.rel (0) target = $region29
    $region28: #{tpu_custom_call.1} parent=1 // pred_region
      _
    $region29: #{tpu_custom_call.1} parent=1 // pred_fallthru
      _
    // Predicated region
    $region30: #{tpu_custom_call.1} parent=1 // pred_check
      _
    $region31: #{tpu_custom_call.1} parent=1 // pred_check_branch
      %39 = sbr.rel (0) target = $region33
    $region32: #{tpu_custom_call.1} parent=1 // pred_region
      %40 = dma.done [#allocation3], 512
    $region33: #{tpu_custom_call.1} parent=1 // pred_fallthru
      _
    %v41 = vld [vmem:[%s0] sm:$0xff]
    %v42 = vld [vmem:[#allocation2] sm:$0xff]
    %v43 = vld [vmem:[#allocation2 + $0x8] sm:$0xff]
    %v44 = vld [vmem:[#allocation2 + $0x10] sm:$0xff]
    %v45 = vld [vmem:[#allocation2 + $0x18] sm:$0xff]
    %v46 = vld [vmem:[%s2] sm:$0x1]
    %v48 = vlaneseq
    %v49 = vshrl.u32 %v48, 7
    %v50 = vsub.s32 0, %v49
    %v51 = vrot.slane %v46, %v50
    %vm53 = vcmask 261120
    %v55 = vsel %vm53, %v41, 0
    %57 = vmatprep.subr.mxu0 0.0
    %58 = vmatpush1.msra.mxu0 0.0
    %59 = vmatprep.subr.mxu0 0.0
    %60 = vmatpush1.msra.mxu0 0.0
    %61 = vmatprep.subr.mxu0 0.0
    %62 = vmatpush1.msra.mxu0 0.0
    %63 = vmatprep.subr.mxu0 0.0
    %64 = vmatpush1.msra.mxu0 0.0
    %65 = vmatprep.subr.mxu0 0.0
    %66 = vmatpush1.msra.mxu0 0.0
    %67 = vmatprep.subr.mxu0 0.0
    %68 = vmatpush1.msra.mxu0 0.0
    %69 = vmatprep.subr.mxu0 0.0
    %70 = vmatpush1.msra.mxu0 0.0
    %71 = vmatprep.subr.mxu0 0.0
    %72 = vmatpush1.msra.mxu0 0.0
    %73 = vmatprep.subr.mxu0 0.0
    %74 = vmatpush1.msra.mxu0 0.0
    %75 = vmatprep.subr.mxu0 0.0
    %76 = vmatpush1.msra.mxu0 0.0
    %77 = vmatprep.subr.mxu0 0.0
    %78 = vmatpush1.msra.mxu0 0.0
    %79 = vmatprep.subr.mxu0 0.0
    %80 = vmatpush1.msra.mxu0 0.0
    %81 = vmatprep.subr.mxu0 0.0
    %82 = vmatpush1.msra.mxu0 %v45
    %83 = vmatprep.subr.mxu0 0.0
    %84 = vmatpush1.msra.mxu0 %v44
    %85 = vmatprep.subr.mxu0 0.0
    %86 = vmatpush1.msra.mxu0 %v43
    %87 = vmatprep.subr.mxu0 0.0
    %88 = vmatpush1.msra.mxu0 %v42
    %89 = vmatprep.subr.mxu0 0.0
    %90 = vmatpush2.msra.mxu0 0.0
    %91 = vmatprep.subr.mxu0 0.0
    %92 = vmatpush2.msra.mxu0 0.0
    %93 = vmatprep.subr.mxu0 0.0
    %94 = vmatpush2.msra.mxu0 0.0
    %95 = vmatprep.subr.mxu0 0.0
    %96 = vmatpush2.msra.mxu0 0.0
    %97 = vmatprep.subr.mxu0 0.0
    %98 = vmatpush2.msra.mxu0 0.0
    %99 = vmatprep.subr.mxu0 0.0
    %100 = vmatpush2.msra.mxu0 0.0
    %101 = vmatprep.subr.mxu0 0.0
    %102 = vmatpush2.msra.mxu0 0.0
    %103 = vmatprep.subr.mxu0 0.0
    %104 = vmatpush2.msra.mxu0 0.0
    %105 = vmatprep.subr.mxu0 0.0
    %106 = vmatpush2.msra.mxu0 0.0
    %107 = vmatprep.subr.mxu0 0.0
    %108 = vmatpush2.msra.mxu0 0.0
    %109 = vmatprep.subr.mxu0 0.0
    %110 = vmatpush2.msra.mxu0 0.0
    %111 = vmatprep.subr.mxu0 0.0
    %112 = vmatpush2.msra.mxu0 0.0
    %113 = vmatprep.subr.mxu0 0.0
    %114 = vmatpush2.msra.mxu0 0.0
    %115 = vmatprep.subr.mxu0 0.0
    %116 = vmatpush2.msra.mxu0 0.0
    %117 = vmatprep.subr.mxu0 0.0
    %118 = vmatpush2.msra.mxu0 0.0
    %119 = vmatprep.subr.mxu0 0.0
    %120 = vmatpush2.msra.mxu0 0.0
    %121 = vmatprep.mubr.f32.mxu0 0.0
    %122 = vmatmul.mubr.f32.gmra.mxu0 %v55
    %v123 = vpop.f32.mrf.mxu0
    %v124 = vadd.f32 %v51, %v123
    %v125 = vpop.f32.mrf.mxu0
    %126 = vdwg.mxu0
    %v127 = vmul.f32 %v124, 0.5
    %v128 = vmul.f32 %v124, 0.70710677
    %v129 = verf.f32.pop %v128
    %v130 = vadd.f32 %v129, 1.0
    %v131 = vmul.f32 %v127, %v130
    %v132 = vld [vmem:[%s3] sm:$0xff]
    %v133 = vld [vmem:[%s3 + $0x8] sm:$0xff]
    %v134 = vld [vmem:[%s3 + $0x10] sm:$0xff]
    %v135 = vld [vmem:[%s3 + $0x18] sm:$0xff]
    %v136 = vld [vmem:[%s3 + $0x20] sm:$0xff]
    %v137 = vld [vmem:[%s3 + $0x28] sm:$0xff]
    %v138 = vld [vmem:[%s3 + $0x30] sm:$0xff]
    %v139 = vld [vmem:[%s3 + $0x38] sm:$0xff]
    %v140 = vld [vmem:[%s3 + $0x40] sm:$0xff]
    %v141 = vld [vmem:[%s3 + $0x48] sm:$0xff]
    %v142 = vld [vmem:[%s3 + $0x50] sm:$0xff]
    %v143 = vld [vmem:[%s3 + $0x58] sm:$0xff]
    %v144 = vld [vmem:[%s3 + $0x60] sm:$0xff]
    %v145 = vld [vmem:[%s3 + $0x68] sm:$0xff]
    %v146 = vld [vmem:[%s3 + $0x70] sm:$0xff]
    %v147 = vld [vmem:[%s3 + $0x78] sm:$0xff]
    %v148 = vld [vmem:[%s4] sm:$0x1]
    %v150 = vlaneseq
    %v151 = vshrl.u32 %v150, 7
    %v152 = vsub.s32 0, %v151
    %v153 = vrot.slane %v148, %v152
    %155 = vmatprep.subr.mxu0 0.0
    %156 = vmatpush1.msra.mxu0 %v147
    %157 = vmatprep.subr.mxu0 0.0
    %158 = vmatpush1.msra.mxu0 %v146
    %159 = vmatprep.subr.mxu0 0.0
    %160 = vmatpush1.msra.mxu0 %v145
    %161 = vmatprep.subr.mxu0 0.0
    %162 = vmatpush1.msra.mxu0 %v144
    %163 = vmatprep.subr.mxu0 0.0
    %164 = vmatpush1.msra.mxu0 %v143
    %165 = vmatprep.subr.mxu0 0.0
    %166 = vmatpush1.msra.mxu0 %v142
    %167 = vmatprep.subr.mxu0 0.0
    %168 = vmatpush1.msra.mxu0 %v141
    %169 = vmatprep.subr.mxu0 0.0
    %170 = vmatpush1.msra.mxu0 %v140
    %171 = vmatprep.subr.mxu0 0.0
    %172 = vmatpush1.msra.mxu0 %v139
    %173 = vmatprep.subr.mxu0 0.0
    %174 = vmatpush1.msra.mxu0 %v138
    %175 = vmatprep.subr.mxu0 0.0
    %176 = vmatpush1.msra.mxu0 %v137
    %177 = vmatprep.subr.mxu0 0.0
    %178 = vmatpush1.msra.mxu0 %v136
    %179 = vmatprep.subr.mxu0 0.0
    %180 = vmatpush1.msra.mxu0 %v135
    %181 = vmatprep.subr.mxu0 0.0
    %182 = vmatpush1.msra.mxu0 %v134
    %183 = vmatprep.subr.mxu0 0.0
    %184 = vmatpush1.msra.mxu0 %v133
    %185 = vmatprep.subr.mxu0 0.0
    %186 = vmatpush1.msra.mxu0 %v132
    %187 = vmatprep.subr.mxu0 0.0
    %188 = vmatpush2.msra.mxu0 0.0
    %189 = vmatprep.subr.mxu0 0.0
    %190 = vmatpush2.msra.mxu0 0.0
    %191 = vmatprep.subr.mxu0 0.0
    %192 = vmatpush2.msra.mxu0 0.0
    %193 = vmatprep.subr.mxu0 0.0
    %194 = vmatpush2.msra.mxu0 0.0
    %195 = vmatprep.subr.mxu0 0.0
    %196 = vmatpush2.msra.mxu0 0.0
    %197 = vmatprep.subr.mxu0 0.0
    %198 = vmatpush2.msra.mxu0 0.0
    %199 = vmatprep.subr.mxu0 0.0
    %200 = vmatpush2.msra.mxu0 0.0
    %201 = vmatprep.subr.mxu0 0.0
    %202 = vmatpush2.msra.mxu0 0.0
    %203 = vmatprep.subr.mxu0 0.0
    %204 = vmatpush2.msra.mxu0 0.0
    %205 = vmatprep.subr.mxu0 0.0
    %206 = vmatpush2.msra.mxu0 0.0
    %207 = vmatprep.subr.mxu0 0.0
    %208 = vmatpush2.msra.mxu0 0.0
    %209 = vmatprep.subr.mxu0 0.0
    %210 = vmatpush2.msra.mxu0 0.0
    %211 = vmatprep.subr.mxu0 0.0
    %212 = vmatpush2.msra.mxu0 0.0
    %213 = vmatprep.subr.mxu0 0.0
    %214 = vmatpush2.msra.mxu0 0.0
    %215 = vmatprep.subr.mxu0 0.0
    %216 = vmatpush2.msra.mxu0 0.0
    %217 = vmatprep.subr.mxu0 0.0
    %218 = vmatpush2.msra.mxu0 0.0
    %219 = vmatprep.mubr.f32.mxu0 0.0
    %220 = vmatmul.mubr.f32.gmra.mxu0 %v131
    %v221 = vpop.f32.mrf.mxu0
    %v222 = vadd.f32 %v153, %v221
    %v223 = vpop.f32.mrf.mxu0
    %224 = vdwg.mxu0
    %v225 = vmul.f32 %v222, 0.5
    %v226 = vmul.f32 %v222, 0.70710677
    %v227 = verf.f32.pop %v226
    %v228 = vadd.f32 %v227, 1.0
    %v229 = vmul.f32 %v225, %v228
    %v230 = vld [vmem:[%s5] sm:$0xff]
    %v231 = vld [vmem:[%s5 + $0x8] sm:$0xff]
    %v232 = vld [vmem:[%s5 + $0x10] sm:$0xff]
    %v233 = vld [vmem:[%s5 + $0x18] sm:$0xff]
    %v234 = vld [vmem:[%s5 + $0x20] sm:$0xff]
    %v235 = vld [vmem:[%s5 + $0x28] sm:$0xff]
    %v236 = vld [vmem:[%s5 + $0x30] sm:$0xff]
    %v237 = vld [vmem:[%s5 + $0x38] sm:$0xff]
    %v238 = vld [vmem:[%s5 + $0x40] sm:$0xff]
    %v239 = vld [vmem:[%s5 + $0x48] sm:$0xff]
    %v240 = vld [vmem:[%s5 + $0x50] sm:$0xff]
    %v241 = vld [vmem:[%s5 + $0x58] sm:$0xff]
    %v242 = vld [vmem:[%s5 + $0x60] sm:$0xff]
    %v243 = vld [vmem:[%s5 + $0x68] sm:$0xff]
    %v244 = vld [vmem:[%s5 + $0x70] sm:$0xff]
    %v245 = vld [vmem:[%s5 + $0x78] sm:$0xff]
    %v246 = vld [vmem:[%s6] sm:$0x1]
    %v248 = vlaneseq
    %v249 = vshrl.u32 %v248, 7
    %v250 = vsub.s32 0, %v249
    %v251 = vrot.slane %v246, %v250
    %253 = vmatprep.subr.mxu0 0.0
    %254 = vmatpush1.msra.mxu0 %v245
    %255 = vmatprep.subr.mxu0 0.0
    %256 = vmatpush1.msra.mxu0 %v244
    %257 = vmatprep.subr.mxu0 0.0
    %258 = vmatpush1.msra.mxu0 %v243
    %259 = vmatprep.subr.mxu0 0.0
    %260 = vmatpush1.msra.mxu0 %v242
    %261 = vmatprep.subr.mxu0 0.0
    %262 = vmatpush1.msra.mxu0 %v241
    %263 = vmatprep.subr.mxu0 0.0
    %264 = vmatpush1.msra.mxu0 %v240
    %265 = vmatprep.subr.mxu0 0.0
    %266 = vmatpush1.msra.mxu0 %v239
    %267 = vmatprep.subr.mxu0 0.0
    %268 = vmatpush1.msra.mxu0 %v238
    %269 = vmatprep.subr.mxu0 0.0
    %270 = vmatpush1.msra.mxu0 %v237
    %271 = vmatprep.subr.mxu0 0.0
    %272 = vmatpush1.msra.mxu0 %v236
    %273 = vmatprep.subr.mxu0 0.0
    %274 = vmatpush1.msra.mxu0 %v235
    %275 = vmatprep.subr.mxu0 0.0
    %276 = vmatpush1.msra.mxu0 %v234
    %277 = vmatprep.subr.mxu0 0.0
    %278 = vmatpush1.msra.mxu0 %v233
    %279 = vmatprep.subr.mxu0 0.0
    %280 = vmatpush1.msra.mxu0 %v232
    %281 = vmatprep.subr.mxu0 0.0
    %282 = vmatpush1.msra.mxu0 %v231
    %283 = vmatprep.subr.mxu0 0.0
    %284 = vmatpush1.msra.mxu0 %v230
    %285 = vmatprep.subr.mxu0 0.0
    %286 = vmatpush2.msra.mxu0 0.0
    %287 = vmatprep.subr.mxu0 0.0
    %288 = vmatpush2.msra.mxu0 0.0
    %289 = vmatprep.subr.mxu0 0.0
    %290 = vmatpush2.msra.mxu0 0.0
    %291 = vmatprep.subr.mxu0 0.0
    %292 = vmatpush2.msra.mxu0 0.0
    %293 = vmatprep.subr.mxu0 0.0
    %294 = vmatpush2.msra.mxu0 0.0
    %295 = vmatprep.subr.mxu0 0.0
    %296 = vmatpush2.msra.mxu0 0.0
    %297 = vmatprep.subr.mxu0 0.0
    %298 = vmatpush2.msra.mxu0 0.0
    %299 = vmatprep.subr.mxu0 0.0
    %300 = vmatpush2.msra.mxu0 0.0
    %301 = vmatprep.subr.mxu0 0.0
    %302 = vmatpush2.msra.mxu0 0.0
    %303 = vmatprep.subr.mxu0 0.0
    %304 = vmatpush2.msra.mxu0 0.0
    %305 = vmatprep.subr.mxu0 0.0
    %306 = vmatpush2.msra.mxu0 0.0
    %307 = vmatprep.subr.mxu0 0.0
    %308 = vmatpush2.msra.mxu0 0.0
    %309 = vmatprep.subr.mxu0 0.0
    %310 = vmatpush2.msra.mxu0 0.0
    %311 = vmatprep.subr.mxu0 0.0
    %312 = vmatpush2.msra.mxu0 0.0
    %313 = vmatprep.subr.mxu0 0.0
    %314 = vmatpush2.msra.mxu0 0.0
    %315 = vmatprep.subr.mxu0 0.0
    %316 = vmatpush2.msra.mxu0 0.0
    %317 = vmatprep.mubr.f32.mxu0 0.0
    %318 = vmatmul.mubr.f32.gmra.mxu0 %v229
    %v319 = vpop.f32.mrf.mxu0
    %v320 = vadd.f32 %v251, %v319
    %v321 = vpop.f32.mrf.mxu0
    %322 = vdwg.mxu0
    %vm323 = vcmask 130048
    %324 = vst.msk [vmem:[#allocation5] sm:$0xff] %vm323, %v320
    // Predicated region
    $region34: #{tpu_custom_call.1} parent=1 // pred_check
      _
    $region35: #{tpu_custom_call.1} parent=1 // pred_check_branch
      %326 = sbr.rel (0) target = $region37
    $region36: #{tpu_custom_call.1} parent=1 // pred_region
      %s328 = ssub.s32 128, 128
      %329 = vsyncadd [#allocation4], %s328
      %s331 = sshll.u32 [#allocation5], 4
      %s332 = int_to_ptr.vmem [resolvable:$true] %s331
      %334 = dma.vmem_to_hbm [thread:$0]  %s332, 128, %s7, [#allocation4]
    $region37: #{tpu_custom_call.1} parent=1 // pred_fallthru
      _
    // Predicated region
    $region38: #{tpu_custom_call.1} parent=1 // pred_check
      _
    $region39: #{tpu_custom_call.1} parent=1 // pred_check_branch
      %336 = sbr.rel (0) target = $region41
    $region40: #{tpu_custom_call.1} parent=1 // pred_region
      %337 = dma.done [#allocation4], 128
    $region41: #{tpu_custom_call.1} parent=1 // pred_fallthru
      _
    %338 = vsyncpa [#allocation3], 1
    %339 = vsyncpa [#allocation4], 1

// kernel: tpu_custom_call.1
$region0: #{tpu_custom_call.1}
  #allocation0 [shape = 'u32[]', space=smem, size = 0x4, offset = 0x4, fixed_abs, tag = 'smem constant byte address 0x4 - core index']
  #allocation1 [shape = 'u32[144,128]{1,0:T(1,128)}', space=vmem, size = 0x12000, scoped, tag = 'internal scratch']
  %s0 = inlined_call_operand.vmem [shape: f32[8,32], index: 0, kind: input, shape index: {}]
  %s1 = inlined_call_operand.hbm [shape: f32[32,128], index: 1, kind: input, shape index: {}]
  %s2 = inlined_call_operand.vmem [shape: f32[1,128], index: 2, kind: input, shape index: {}]
  %s3 = inlined_call_operand.vmem [shape: f32[128,128], index: 3, kind: input, shape index: {}]
  %s4 = inlined_call_operand.vmem [shape: f32[1,128], index: 4, kind: input, shape index: {}]
  %s5 = inlined_call_operand.vmem [shape: f32[128,16], index: 5, kind: input, shape index: {}]
  %s6 = inlined_call_operand.vmem [shape: f32[1,16], index: 6, kind: input, shape index: {}]
  %s7 = inlined_call_operand.hbm [shape: f32[8,16], index: 7, kind: output, shape index: {}]
  %s8 = sld [smem:[#allocation0]]
  $region42: #{tpu_custom_call.1} parent=0
    _
  %s10 = ssub.s32 1, %s8
  %s11 = scalar_select 0, %s10, %s8
  $region1: #{tpu_custom_call.1} parent=0
    #allocation2 [shape = 'u8[16384]{0}', space=vmem, size = 0x4000, scoped, tag = 'input window, operand 1, single buffered']
    #allocation3 [shape = 's32[1]{0}', space=sflag, size = 0x4, scoped, tag = 'scoped memory for tpu_custom_call.1']
    #allocation4 [shape = 's32[1]{0}', space=sflag, size = 0x4, scoped, tag = 'scoped memory for tpu_custom_call.1']
    #allocation5 [shape = 'u8[4096]{0}', space=vmem, size = 0x1000, scoped, tag = 'output window, operand 0, single buffered']
    %12 = vsyncpa [#allocation3], 0
    %13 = vsyncpa [#allocation4], 0
    // Predicated region
    $region2: #{tpu_custom_call.1} parent=1 // pred_check
      _
    $region3: #{tpu_custom_call.1} parent=1 // pred_check_branch
      %15 = sbr.rel (0) target = $region5
    $region4: #{tpu_custom_call.1} parent=1 // pred_region
      _
    $region5: #{tpu_custom_call.1} parent=1 // pred_fallthru
      _
    // Predicated region
    $region6: #{tpu_custom_call.1} parent=1 // pred_check
      _
    $region7: #{tpu_custom_call.1} parent=1 // pred_check_branch
      %17 = sbr.rel (0) target = $region9
    $region8: #{tpu_custom_call.1} parent=1 // pred_region
      %s19 = ssub.s32 512, 512
      %20 = vsyncadd [#allocation3], %s19
      %s21 = sshll.u32 [#allocation2], 4
      %s22 = int_to_ptr.vmem [resolvable:$true] %s21
      %27 = dma.hbm_to_vmem [thread:$0]  %s1, 512, %s22, [#allocation3], 128, 128, 8
    $region9: #{tpu_custom_call.1} parent=1 // pred_fallthru
      _
    // Predicated region
    $region10: #{tpu_custom_call.1} parent=1 // pred_check
      _
    $region11: #{tpu_custom_call.1} parent=1 // pred_check_branch
      %29 = sbr.rel (0) target = $region13
    $region12: #{tpu_custom_call.1} parent=1 // pred_region
      _
    $region13: #{tpu_custom_call.1} parent=1 // pred_fallthru
      _
    // Predicated region
    $region14: #{tpu_custom_call.1} parent=1 // pred_check
      _
    $region15: #{tpu_custom_call.1} parent=1 // pred_check_branch
      %31 = sbr.rel (0) target = $region17
    $region16: #{tpu_custom_call.1} parent=1 // pred_region
      _
    $region17: #{tpu_custom_call.1} parent=1 // pred_fallthru
      _
    // Predicated region
    $region18: #{tpu_custom_call.1} parent=1 // pred_check
      _
    $region19: #{tpu_custom_call.1} parent=1 // pred_check_branch
      %33 = sbr.rel (0) target = $region21
    $region20: #{tpu_custom_call.1} parent=1 // pred_region
      _
    $region21: #{tpu_custom_call.1} parent=1 // pred_fallthru
      _
    // Predicated region
    $region22: #{tpu_custom_call.1} parent=1 // pred_check
      _
    $region23: #{tpu_custom_call.1} parent=1 // pred_check_branch
      %35 = sbr.rel (0) target = $region25
    $region24: #{tpu_custom_call.1} parent=1 // pred_region
      _
    $region25: #{tpu_custom_call.1} parent=1 // pred_fallthru
      _
    // Predicated region
    $region26: #{tpu_custom_call.1} parent=1 // pred_check
      _
    $region27: #{tpu_custom_call.1} parent=1 // pred_check_branch
      %37 = sbr.rel (0) target = $region29
    $region28: #{tpu_custom_call.1} parent=1 // pred_region
      _
    $region29: #{tpu_custom_call.1} parent=1 // pred_fallthru
      _
    // Predicated region
    $region30: #{tpu_custom_call.1} parent=1 // pred_check
      _
    $region31: #{tpu_custom_call.1} parent=1 // pred_check_branch
      %39 = sbr.rel (0) target = $region33
    $region32: #{tpu_custom_call.1} parent=1 // pred_region
      %40 = dma.done [#allocation3], 512
    $region33: #{tpu_custom_call.1} parent=1 // pred_fallthru
      _
    %v41 = vld [vmem:[%s0] sm:$0xff]
    %v42 = vld [vmem:[#allocation2] sm:$0xff]
    %v43 = vld [vmem:[#allocation2 + $0x8] sm:$0xff]
    %v44 = vld [vmem:[#allocation2 + $0x10] sm:$0xff]
    %v45 = vld [vmem:[#allocation2 + $0x18] sm:$0xff]
    %v46 = vld [vmem:[%s2] sm:$0x1]
    %v48 = vlaneseq
    %v49 = vshrl.u32 %v48, 7
    %v50 = vsub.s32 0, %v49
    %v51 = vrot.slane %v46, %v50
    %vm53 = vcmask 261120
    %v55 = vsel %vm53, %v41, 0
    %57 = vmatprep.subr.mxu0 0.0
    %58 = vmatpush1.msra.mxu0 0.0
    %59 = vmatprep.subr.mxu0 0.0
    %60 = vmatpush1.msra.mxu0 0.0
    %61 = vmatprep.subr.mxu0 0.0
    %62 = vmatpush1.msra.mxu0 0.0
    %63 = vmatprep.subr.mxu0 0.0
    %64 = vmatpush1.msra.mxu0 0.0
    %65 = vmatprep.subr.mxu0 0.0
    %66 = vmatpush1.msra.mxu0 0.0
    %67 = vmatprep.subr.mxu0 0.0
    %68 = vmatpush1.msra.mxu0 0.0
    %69 = vmatprep.subr.mxu0 0.0
    %70 = vmatpush1.msra.mxu0 0.0
    %71 = vmatprep.subr.mxu0 0.0
    %72 = vmatpush1.msra.mxu0 0.0
    %73 = vmatprep.subr.mxu0 0.0
    %74 = vmatpush1.msra.mxu0 0.0
    %75 = vmatprep.subr.mxu0 0.0
    %76 = vmatpush1.msra.mxu0 0.0
    %77 = vmatprep.subr.mxu0 0.0
    %78 = vmatpush1.msra.mxu0 0.0
    %79 = vmatprep.subr.mxu0 0.0
    %80 = vmatpush1.msra.mxu0 0.0
    %81 = vmatprep.subr.mxu0 0.0
    %82 = vmatpush1.msra.mxu0 %v45
    %83 = vmatprep.subr.mxu0 0.0
    %84 = vmatpush1.msra.mxu0 %v44
    %85 = vmatprep.subr.mxu0 0.0
    %86 = vmatpush1.msra.mxu0 %v43
    %87 = vmatprep.subr.mxu0 0.0
    %88 = vmatpush1.msra.mxu0 %v42
    %89 = vmatprep.subr.mxu0 0.0
    %90 = vmatpush2.msra.mxu0 0.0
    %91 = vmatprep.subr.mxu0 0.0
    %92 = vmatpush2.msra.mxu0 0.0
    %93 = vmatprep.subr.mxu0 0.0
    %94 = vmatpush2.msra.mxu0 0.0
    %95 = vmatprep.subr.mxu0 0.0
    %96 = vmatpush2.msra.mxu0 0.0
    %97 = vmatprep.subr.mxu0 0.0
    %98 = vmatpush2.msra.mxu0 0.0
    %99 = vmatprep.subr.mxu0 0.0
    %100 = vmatpush2.msra.mxu0 0.0
    %101 = vmatprep.subr.mxu0 0.0
    %102 = vmatpush2.msra.mxu0 0.0
    %103 = vmatprep.subr.mxu0 0.0
    %104 = vmatpush2.msra.mxu0 0.0
    %105 = vmatprep.subr.mxu0 0.0
    %106 = vmatpush2.msra.mxu0 0.0
    %107 = vmatprep.subr.mxu0 0.0
    %108 = vmatpush2.msra.mxu0 0.0
    %109 = vmatprep.subr.mxu0 0.0
    %110 = vmatpush2.msra.mxu0 0.0
    %111 = vmatprep.subr.mxu0 0.0
    %112 = vmatpush2.msra.mxu0 0.0
    %113 = vmatprep.subr.mxu0 0.0
    %114 = vmatpush2.msra.mxu0 0.0
    %115 = vmatprep.subr.mxu0 0.0
    %116 = vmatpush2.msra.mxu0 0.0
    %117 = vmatprep.subr.mxu0 0.0
    %118 = vmatpush2.msra.mxu0 0.0
    %119 = vmatprep.subr.mxu0 0.0
    %120 = vmatpush2.msra.mxu0 0.0
    %121 = vmatprep.mubr.f32.mxu0 0.0
    %122 = vmatmul.mubr.f32.gmra.mxu0 %v55
    %v123 = vpop.f32.mrf.mxu0
    %v124 = vadd.f32 %v51, %v123
    %v125 = vpop.f32.mrf.mxu0
    %126 = vdwg.mxu0
    %v127 = vmul.f32 %v124, 0.5
    %v128 = vmul.f32 %v124, 0.70710677
    %v129 = verf.f32.pop %v128
    %v130 = vadd.f32 %v129, 1.0
    %v131 = vmul.f32 %v127, %v130
    %v132 = vld [vmem:[%s3] sm:$0xff]
    %v133 = vld [vmem:[%s3 + $0x8] sm:$0xff]
    %v134 = vld [vmem:[%s3 + $0x10] sm:$0xff]
    %v135 = vld [vmem:[%s3 + $0x18] sm:$0xff]
    %v136 = vld [vmem:[%s3 + $0x20] sm:$0xff]
    %v137 = vld [vmem:[%s3 + $0x28] sm:$0xff]
    %v138 = vld [vmem:[%s3 + $0x30] sm:$0xff]
    %v139 = vld [vmem:[%s3 + $0x38] sm:$0xff]
    %v140 = vld [vmem:[%s3 + $0x40] sm:$0xff]
    %v141 = vld [vmem:[%s3 + $0x48] sm:$0xff]
    %v142 = vld [vmem:[%s3 + $0x50] sm:$0xff]
    %v143 = vld [vmem:[%s3 + $0x58] sm:$0xff]
    %v144 = vld [vmem:[%s3 + $0x60] sm:$0xff]
    %v145 = vld [vmem:[%s3 + $0x68] sm:$0xff]
    %v146 = vld [vmem:[%s3 + $0x70] sm:$0xff]
    %v147 = vld [vmem:[%s3 + $0x78] sm:$0xff]
    %v148 = vld [vmem:[%s4] sm:$0x1]
    %v150 = vlaneseq
    %v151 = vshrl.u32 %v150, 7
    %v152 = vsub.s32 0, %v151
    %v153 = vrot.slane %v148, %v152
    %155 = vmatprep.subr.mxu0 0.0
    %156 = vmatpush1.msra.mxu0 %v147
    %157 = vmatprep.subr.mxu0 0.0
    %158 = vmatpush1.msra.mxu0 %v146
    %159 = vmatprep.subr.mxu0 0.0
    %160 = vmatpush1.msra.mxu0 %v145
    %161 = vmatprep.subr.mxu0 0.0
    %162 = vmatpush1.msra.mxu0 %v144
    %163 = vmatprep.subr.mxu0 0.0
    %164 = vmatpush1.msra.mxu0 %v143
    %165 = vmatprep.subr.mxu0 0.0
    %166 = vmatpush1.msra.mxu0 %v142
    %167 = vmatprep.subr.mxu0 0.0
    %168 = vmatpush1.msra.mxu0 %v141
    %169 = vmatprep.subr.mxu0 0.0
    %170 = vmatpush1.msra.mxu0 %v140
    %171 = vmatprep.subr.mxu0 0.0
    %172 = vmatpush1.msra.mxu0 %v139
    %173 = vmatprep.subr.mxu0 0.0
    %174 = vmatpush1.msra.mxu0 %v138
    %175 = vmatprep.subr.mxu0 0.0
    %176 = vmatpush1.msra.mxu0 %v137
    %177 = vmatprep.subr.mxu0 0.0
    %178 = vmatpush1.msra.mxu0 %v136
    %179 = vmatprep.subr.mxu0 0.0
    %180 = vmatpush1.msra.mxu0 %v135
    %181 = vmatprep.subr.mxu0 0.0
    %182 = vmatpush1.msra.mxu0 %v134
    %183 = vmatprep.subr.mxu0 0.0
    %184 = vmatpush1.msra.mxu0 %v133
    %185 = vmatprep.subr.mxu0 0.0
    %186 = vmatpush1.msra.mxu0 %v132
    %187 = vmatprep.subr.mxu0 0.0
    %188 = vmatpush2.msra.mxu0 0.0
    %189 = vmatprep.subr.mxu0 0.0
    %190 = vmatpush2.msra.mxu0 0.0
    %191 = vmatprep.subr.mxu0 0.0
    %192 = vmatpush2.msra.mxu0 0.0
    %193 = vmatprep.subr.mxu0 0.0
    %194 = vmatpush2.msra.mxu0 0.0
    %195 = vmatprep.subr.mxu0 0.0
    %196 = vmatpush2.msra.mxu0 0.0
    %197 = vmatprep.subr.mxu0 0.0
    %198 = vmatpush2.msra.mxu0 0.0
    %199 = vmatprep.subr.mxu0 0.0
    %200 = vmatpush2.msra.mxu0 0.0
    %201 = vmatprep.subr.mxu0 0.0
    %202 = vmatpush2.msra.mxu0 0.0
    %203 = vmatprep.subr.mxu0 0.0
    %204 = vmatpush2.msra.mxu0 0.0
    %205 = vmatprep.subr.mxu0 0.0
    %206 = vmatpush2.msra.mxu0 0.0
    %207 = vmatprep.subr.mxu0 0.0
    %208 = vmatpush2.msra.mxu0 0.0
    %209 = vmatprep.subr.mxu0 0.0
    %210 = vmatpush2.msra.mxu0 0.0
    %211 = vmatprep.subr.mxu0 0.0
    %212 = vmatpush2.msra.mxu0 0.0
    %213 = vmatprep.subr.mxu0 0.0
    %214 = vmatpush2.msra.mxu0 0.0
    %215 = vmatprep.subr.mxu0 0.0
    %216 = vmatpush2.msra.mxu0 0.0
    %217 = vmatprep.subr.mxu0 0.0
    %218 = vmatpush2.msra.mxu0 0.0
    %219 = vmatprep.mubr.f32.mxu0 0.0
    %220 = vmatmul.mubr.f32.gmra.mxu0 %v131
    %v221 = vpop.f32.mrf.mxu0
    %v222 = vadd.f32 %v153, %v221
    %v223 = vpop.f32.mrf.mxu0
    %224 = vdwg.mxu0
    %v225 = vmul.f32 %v222, 0.5
    %v226 = vmul.f32 %v222, 0.70710677
    %v227 = verf.f32.pop %v226
    %v228 = vadd.f32 %v227, 1.0
    %v229 = vmul.f32 %v225, %v228
    %v230 = vld [vmem:[%s5] sm:$0xff]
    %v231 = vld [vmem:[%s5 + $0x8] sm:$0xff]
    %v232 = vld [vmem:[%s5 + $0x10] sm:$0xff]
    %v233 = vld [vmem:[%s5 + $0x18] sm:$0xff]
    %v234 = vld [vmem:[%s5 + $0x20] sm:$0xff]
    %v235 = vld [vmem:[%s5 + $0x28] sm:$0xff]
    %v236 = vld [vmem:[%s5 + $0x30] sm:$0xff]
    %v237 = vld [vmem:[%s5 + $0x38] sm:$0xff]
    %v238 = vld [vmem:[%s5 + $0x40] sm:$0xff]
    %v239 = vld [vmem:[%s5 + $0x48] sm:$0xff]
    %v240 = vld [vmem:[%s5 + $0x50] sm:$0xff]
    %v241 = vld [vmem:[%s5 + $0x58] sm:$0xff]
    %v242 = vld [vmem:[%s5 + $0x60] sm:$0xff]
    %v243 = vld [vmem:[%s5 + $0x68] sm:$0xff]
    %v244 = vld [vmem:[%s5 + $0x70] sm:$0xff]
    %v245 = vld [vmem:[%s5 + $0x78] sm:$0xff]
    %v246 = vld [vmem:[%s6] sm:$0x1]
    %v248 = vlaneseq
    %v249 = vshrl.u32 %v248, 7
    %v250 = vsub.s32 0, %v249
    %v251 = vrot.slane %v246, %v250
    %253 = vmatprep.subr.mxu0 0.0
    %254 = vmatpush1.msra.mxu0 %v245
    %255 = vmatprep.subr.mxu0 0.0
    %256 = vmatpush1.msra.mxu0 %v244
    %257 = vmatprep.subr.mxu0 0.0
    %258 = vmatpush1.msra.mxu0 %v243
    %259 = vmatprep.subr.mxu0 0.0
    %260 = vmatpush1.msra.mxu0 %v242
    %261 = vmatprep.subr.mxu0 0.0
    %262 = vmatpush1.msra.mxu0 %v241
    %263 = vmatprep.subr.mxu0 0.0
    %264 = vmatpush1.msra.mxu0 %v240
    %265 = vmatprep.subr.mxu0 0.0
    %266 = vmatpush1.msra.mxu0 %v239
    %267 = vmatprep.subr.mxu0 0.0
    %268 = vmatpush1.msra.mxu0 %v238
    %269 = vmatprep.subr.mxu0 0.0
    %270 = vmatpush1.msra.mxu0 %v237
    %271 = vmatprep.subr.mxu0 0.0
    %272 = vmatpush1.msra.mxu0 %v236
    %273 = vmatprep.subr.mxu0 0.0
    %274 = vmatpush1.msra.mxu0 %v235
    %275 = vmatprep.subr.mxu0 0.0
    %276 = vmatpush1.msra.mxu0 %v234
    %277 = vmatprep.subr.mxu0 0.0
    %278 = vmatpush1.msra.mxu0 %v233
    %279 = vmatprep.subr.mxu0 0.0
    %280 = vmatpush1.msra.mxu0 %v232
    %281 = vmatprep.subr.mxu0 0.0
    %282 = vmatpush1.msra.mxu0 %v231
    %283 = vmatprep.subr.mxu0 0.0
    %284 = vmatpush1.msra.mxu0 %v230
    %285 = vmatprep.subr.mxu0 0.0
    %286 = vmatpush2.msra.mxu0 0.0
    %287 = vmatprep.subr.mxu0 0.0
    %288 = vmatpush2.msra.mxu0 0.0
    %289 = vmatprep.subr.mxu0 0.0
    %290 = vmatpush2.msra.mxu0 0.0
    %291 = vmatprep.subr.mxu0 0.0
    %292 = vmatpush2.msra.mxu0 0.0
    %293 = vmatprep.subr.mxu0 0.0
    %294 = vmatpush2.msra.mxu0 0.0
    %295 = vmatprep.subr.mxu0 0.0
    %296 = vmatpush2.msra.mxu0 0.0
    %297 = vmatprep.subr.mxu0 0.0
    %298 = vmatpush2.msra.mxu0 0.0
    %299 = vmatprep.subr.mxu0 0.0
    %300 = vmatpush2.msra.mxu0 0.0
    %301 = vmatprep.subr.mxu0 0.0
    %302 = vmatpush2.msra.mxu0 0.0
    %303 = vmatprep.subr.mxu0 0.0
    %304 = vmatpush2.msra.mxu0 0.0
    %305 = vmatprep.subr.mxu0 0.0
    %306 = vmatpush2.msra.mxu0 0.0
    %307 = vmatprep.subr.mxu0 0.0
    %308 = vmatpush2.msra.mxu0 0.0
    %309 = vmatprep.subr.mxu0 0.0
    %310 = vmatpush2.msra.mxu0 0.0
    %311 = vmatprep.subr.mxu0 0.0
    %312 = vmatpush2.msra.mxu0 0.0
    %313 = vmatprep.subr.mxu0 0.0
    %314 = vmatpush2.msra.mxu0 0.0
    %315 = vmatprep.subr.mxu0 0.0
    %316 = vmatpush2.msra.mxu0 0.0
    %317 = vmatprep.mubr.f32.mxu0 0.0
    %318 = vmatmul.mubr.f32.gmra.mxu0 %v229
    %v319 = vpop.f32.mrf.mxu0
    %v320 = vadd.f32 %v251, %v319
    %v321 = vpop.f32.mrf.mxu0
    %322 = vdwg.mxu0
    %vm323 = vcmask 130048
    %324 = vst.msk [vmem:[#allocation5] sm:$0xff] %vm323, %v320
    // Predicated region
    $region34: #{tpu_custom_call.1} parent=1 // pred_check
      _
    $region35: #{tpu_custom_call.1} parent=1 // pred_check_branch
      %326 = sbr.rel (0) target = $region37
    $region36: #{tpu_custom_call.1} parent=1 // pred_region
      %s328 = ssub.s32 128, 128
      %329 = vsyncadd [#allocation4], %s328
      %s331 = sshll.u32 [#allocation5], 4
      %s332 = int_to_ptr.vmem [resolvable:$true] %s331
      %334 = dma.vmem_to_hbm [thread:$0]  %s332, 128, %s7, [#allocation4]
    $region37: #{tpu_custom_call.1} parent=1 // pred_fallthru
      _
    // Predicated region
    $region38: #{tpu_custom_call.1} parent=1 // pred_check
      _
    $region39: #{tpu_custom_call.1} parent=1 // pred_check_branch
      %336 = sbr.rel (0) target = $region41
    $region40: #{tpu_custom_call.1} parent=1 // pred_region
      %337 = dma.done [#allocation4], 128
    $region41: #{tpu_custom_call.1} parent=1 // pred_fallthru
      _
    %338 = vsyncpa [#allocation3], 1
    %339 = vsyncpa [#allocation4], 1

</llo_original>
